<compile_context>
chip_gen: v5e
topology: v5e:2x2
jax: 0.10.0
libtpu: 0.0.40
codegen_flags: <defaults>
</compile_context>

<pallas_src>
import functools

import jax
import jax.numpy as jnp
from jax.experimental import pallas as pl
from jax.experimental.pallas import tpu as pltpu


def _mlp_kernel(x_ref, w1_ref, b1_ref, w2_ref, b2_ref, o_ref, *,
                n_feature, use_vpu_layer1):
    x = x_ref[...]                       # (F, TB)  batch on lanes
    w1 = w1_ref[...]                     # (H, F)   PyTorch (out, in) layout
    b1 = b1_ref[...]                     # (H, 1)

    if use_vpu_layer1:
        # K = F is tiny: the MXU would run at <2% utilization and be
        # FIFO/latency bound.  F unrolled broadcast-FMAs on the VPU, each on a
        # fully lane-packed (H, TB) tile; b1 broadcast hoisted into the init.
        h = b1 + w1[:, 0:1] * x[0:1, :]                 # (H, TB)
        for f in range(1, n_feature):
            h = h + w1[:, f:f + 1] * x[f:f + 1, :]
    else:
        h = jnp.dot(w1, x, preferred_element_type=jnp.float32) + b1

    h = jnp.maximum(h, 0.0)              # ReLU (f32, VPU)

    # Layer 2 on the MXU, transposed form: (O, H) @ (H, TB) -> lane-dense
    # (O, TB) result, stored unmasked.  (On v5e/v6e an unrolled VPU form is a
    # comparable alternative; the MXU form is generic in H/O and cheapest to
    # drain on v7x's MRB.)
    out = jnp.dot(w2_ref[...], h, preferred_element_type=jnp.float32)
    out = out + b2_ref[...]              # (O, TB) + (O, 1) broadcast

    o_ref[...] = out.astype(o_ref.dtype)


def _round_up(x, m):
    return ((x + m - 1) // m) * m


def _default_num_shards():
    # v7x has 2 TensorCores per chip -> prefer 2 large "parallel" grid steps;
    # single-TC v5e/v6e prefer a single step (extra steps are pure overhead).
    try:
        kind = jax.devices()[0].device_kind.lower()
        if "v7" in kind or "7x" in kind:
            return 2
    except Exception:  # pragma: no cover - best-effort heuristic only
        pass
    return 1


def _choose_batch_tiling(B, F, H, O, num_shards):
    """Pick (TB, n_tiles) so streamed VMEM use stays in a portable budget.

    Per grid step: double-buffered x block (F, TB) and out block (O, TB),
    plus the (H, TB) hidden intermediate, all f32:
        bytes_per_col ~= 4 * (2*(F + O) + H)
    8 MiB keeps us far inside the 32 MiB scoped-VMEM default on v5e/v6e/v7x
    (and well under v7x's 64 MiB physical VMEM), so no vmem_limit override
    is needed.
    """
    budget_bytes = 8 * 1024 * 1024
    bytes_per_col = 4 * (2 * (F + O) + H)
    tb_max = max(128, (budget_bytes // bytes_per_col) // 128 * 128)

    tb = min(_round_up(pl.cdiv(B, num_shards), 128), tb_max)
    n_tiles = max(pl.cdiv(B, tb), num_shards)
    return tb, n_tiles


def net_forward(x, w1, b1, w2, b2, *, batch_tile=None, num_shards=None):
    """Net forward: relu(x @ w1.T + b1) @ w2.T + b2   (PyTorch Linear layout).

    x : (B, F) f32
    w1: (H, F), b1: (H,)        (torch.nn.Linear(hidden).weight / .bias)
    w2: (O, H), b2: (O,)        (torch.nn.Linear(predict).weight / .bias)
    returns (B, O)
    """
    B, F = x.shape
    H, F2 = w1.shape
    O, H2 = w2.shape
    assert F == F2 and H == H2, "weight shapes inconsistent with input"

    b1c = b1.reshape(H, 1).astype(jnp.float32)
    b2c = b2.reshape(O, 1).astype(jnp.float32)

    if num_shards is None:
        num_shards = _default_num_shards()
    if batch_tile is None:
        TB, n_tiles = _choose_batch_tiling(B, F, H, O, num_shards)
    else:
        TB = _round_up(batch_tile, 128)
        n_tiles = max(pl.cdiv(B, TB), num_shards)
    Bp = TB * n_tiles

    # Batch onto the lane axis (layout plumbing in the wrapper, not compute).
    xT = x.T                                   # (F, B)
    if Bp != B:
        xT = jnp.pad(xT, ((0, 0), (0, Bp - B)))

    kernel = functools.partial(
        _mlp_kernel, n_feature=F, use_vpu_layer1=(F <= 8))

    outT = pl.pallas_call(
        kernel,
        out_shape=jax.ShapeDtypeStruct((O, Bp), x.dtype),
        grid=(n_tiles,),
        in_specs=[
            pl.BlockSpec((F, TB), lambda i: (0, i)),   # x: streams over batch
            pl.BlockSpec((H, F), lambda i: (0, 0)),    # W1: VMEM-resident
            pl.BlockSpec((H, 1), lambda i: (0, 0)),    # b1: VMEM-resident
            pl.BlockSpec((O, H), lambda i: (0, 0)),    # W2: VMEM-resident
            pl.BlockSpec((O, 1), lambda i: (0, 0)),    # b2: VMEM-resident
        ],
        out_specs=pl.BlockSpec((O, TB), lambda i: (0, i)),
        compiler_params=pltpu.CompilerParams(
            # Batch tiles are independent -> v7x shards the (at most 2) big
            # steps across its 2 TensorCores; harmless no-op on v5e/v6e.
            dimension_semantics=("parallel",),
        ),
    )(xT, w1, b1c, w2, b2c)

    return outT[:, :B].T                       # (B, O)


if __name__ == "__main__":
    # Shapes matching the spec: x = unsqueeze(linspace(-1, 1, 100), 1) -> (100, 1),
    # Net(n_feature=1, n_hidden=32, n_output=1).
    B, F, H, O = 100, 1, 32, 1

    x = jnp.linspace(-1.0, 1.0, B, dtype=jnp.float32).reshape(B, F)

    key = jax.random.PRNGKey(0)
    kw1, kb1, kw2, kb2 = jax.random.split(key, 4)
    # PyTorch nn.Linear stores weight as (out_features, in_features).
    w1 = jax.random.normal(kw1, (H, F), dtype=jnp.float32) * 0.5
    b1 = jax.random.normal(kb1, (H,), dtype=jnp.float32) * 0.5
    w2 = jax.random.normal(kw2, (O, H), dtype=jnp.float32) * 0.5
    b2 = jax.random.normal(kb2, (O,), dtype=jnp.float32) * 0.5

    out = net_forward(x, w1, b1, w2, b2)
    out = jax.block_until_ready(out)

    # Pure-JAX reference check of the forward semantics.
    ref = jnp.maximum(x @ w1.T + b1, 0.0) @ w2.T + b2
    assert out.shape == (B, O)
    assert jnp.allclose(out, ref, atol=1e-5, rtol=1e-5), "mismatch vs reference"

    print("KERNEL_OK")
</pallas_src>

<mosaic_0001>
module attributes {stable_mosaic.version = 11 : i64} {
  func.func @_mlp_kernel(%arg0: i32, %arg1: memref<1x128xf32, #tpu.memory_space<vmem>>, %arg2: memref<32x1xf32, #tpu.memory_space<vmem>>, %arg3: memref<32x1xf32, #tpu.memory_space<vmem>>, %arg4: memref<1x32xf32, #tpu.memory_space<vmem>>, %arg5: memref<1x1xf32, #tpu.memory_space<vmem>>, %arg6: memref<1x128xf32, #tpu.memory_space<vmem>>) attributes {dimension_semantics = [#tpu.dimension_semantics<parallel>], iteration_bounds = array<i64: 1>, scalar_prefetch = 0 : i64, scratch_operands = 0 : i64, tpu.core_type = #tpu.core_type<tc>, window_params = [{transform_indices = @transform_0, window_bounds = array<i64: 1, 128>}, {pipeline_mode = #tpu.pipeline_mode<synchronous>, transform_indices = @transform_1, window_bounds = array<i64: 32, 1>}, {pipeline_mode = #tpu.pipeline_mode<synchronous>, transform_indices = @transform_2, window_bounds = array<i64: 32, 1>}, {pipeline_mode = #tpu.pipeline_mode<synchronous>, transform_indices = @transform_3, window_bounds = array<i64: 1, 32>}, {pipeline_mode = #tpu.pipeline_mode<synchronous>, transform_indices = @transform_4, window_bounds = array<i64: 1, 1>}, {transform_indices = @transform_5, window_bounds = array<i64: 1, 128>}]} {
    %c0 = arith.constant 0 : index
    %c0_0 = arith.constant 0 : index
    %0 = vector.load %arg1[%c0, %c0_0] : memref<1x128xf32, #tpu.memory_space<vmem>>, vector<1x128xf32>
    %c0_1 = arith.constant 0 : index
    %c0_2 = arith.constant 0 : index
    %1 = vector.load %arg2[%c0_1, %c0_2] : memref<32x1xf32, #tpu.memory_space<vmem>>, vector<32x1xf32>
    %c0_3 = arith.constant 0 : index
    %c0_4 = arith.constant 0 : index
    %2 = vector.load %arg3[%c0_3, %c0_4] : memref<32x1xf32, #tpu.memory_space<vmem>>, vector<32x1xf32>
    %3 = vector.broadcast %1 : vector<32x1xf32> to vector<32x128xf32>
    %4 = vector.broadcast %0 : vector<1x128xf32> to vector<32x128xf32>
    %5 = arith.mulf %3, %4 : vector<32x128xf32>
    %6 = vector.broadcast %2 : vector<32x1xf32> to vector<32x128xf32>
    %7 = arith.addf %6, %5 : vector<32x128xf32>
    %cst = arith.constant 0.000000e+00 : f32
    %8 = vector.broadcast %cst : f32 to vector<32x128xf32>
    %9 = arith.maximumf %7, %8 : vector<32x128xf32>
    %c0_5 = arith.constant 0 : index
    %c0_6 = arith.constant 0 : index
    %10 = vector.load %arg4[%c0_5, %c0_6] : memref<1x32xf32, #tpu.memory_space<vmem>>, vector<1x32xf32>
    %cst_7 = arith.constant dense<0.000000e+00> : vector<1x128xf32>
    %11 = tpu.matmul %10, %9, %cst_7 {dimension_numbers = #tpu.dot_dimension_numbers<[1], [0], [0], [1], [0, 0, 1, 1], [], []>} : vector<1x32xf32>, vector<32x128xf32>, vector<1x128xf32> -> vector<1x128xf32>
    %c0_8 = arith.constant 0 : index
    %c0_9 = arith.constant 0 : index
    %12 = vector.load %arg5[%c0_8, %c0_9] : memref<1x1xf32, #tpu.memory_space<vmem>>, vector<1x1xf32>
    %13 = vector.broadcast %12 : vector<1x1xf32> to vector<1x128xf32>
    %14 = arith.addf %11, %13 : vector<1x128xf32>
    %c0_10 = arith.constant 0 : index
    %c0_11 = arith.constant 0 : index
    %15 = vector.load %arg6[%c0_10, %c0_11] : memref<1x128xf32, #tpu.memory_space<vmem>>, vector<1x128xf32>
    tpu.vector_store %arg6[%c0_10, %c0_11], %14 {strides = array<i32>} : memref<1x128xf32, #tpu.memory_space<vmem>>, vector<1x128xf32>,
    return
  }
  func.func @transform_0(%arg0: i32) -> (i32, i32) {
    %c0_i32 = arith.constant 0 : i32
    %c0_i32_0 = arith.constant 0 : i32
    return %c0_i32, %arg0 : i32, i32
  }
  func.func @transform_1(%arg0: i32) -> (i32, i32) {
    %c0_i32 = arith.constant 0 : i32
    %c0_i32_0 = arith.constant 0 : i32
    %c0_i32_1 = arith.constant 0 : i32
    return %c0_i32, %c0_i32_0 : i32, i32
  }
  func.func @transform_2(%arg0: i32) -> (i32, i32) {
    %c0_i32 = arith.constant 0 : i32
    %c0_i32_0 = arith.constant 0 : i32
    %c0_i32_1 = arith.constant 0 : i32
    return %c0_i32, %c0_i32_0 : i32, i32
  }
  func.func @transform_3(%arg0: i32) -> (i32, i32) {
    %c0_i32 = arith.constant 0 : i32
    %c0_i32_0 = arith.constant 0 : i32
    %c0_i32_1 = arith.constant 0 : i32
    return %c0_i32, %c0_i32_0 : i32, i32
  }
  func.func @transform_4(%arg0: i32) -> (i32, i32) {
    %c0_i32 = arith.constant 0 : i32
    %c0_i32_0 = arith.constant 0 : i32
    %c0_i32_1 = arith.constant 0 : i32
    return %c0_i32, %c0_i32_0 : i32, i32
  }
  func.func @transform_5(%arg0: i32) -> (i32, i32) {
    %c0_i32 = arith.constant 0 : i32
    %c0_i32_0 = arith.constant 0 : i32
    return %c0_i32, %arg0 : i32, i32
  }
}

</mosaic_0001>

<llo_original>
// kernel: tpu_custom_call.1
$region0: #{tpu_custom_call.1}
  #allocation0 [shape = 'u32[]', space=smem, size = 0x4, offset = 0x4, fixed_abs, tag = 'smem constant byte address 0x4 - core index']
  #allocation1 [shape = 'u32[72,128]{1,0:T(1,128)}', space=vmem, size = 0x9000, scoped, tag = 'internal scratch']
  #allocation2 [shape = 'f32[1,1]{1,0:T(1,128)S(1)}', space=vmem, size = 0x200, scoped, tag = 'scoped memory for tpu_custom_call.1']
  %s0 = inlined_call_operand.vmem [shape: f32[1,128], index: 0, kind: input, shape index: {}]
  %s1 = inlined_call_operand.vmem [shape: f32[32,1], index: 1, kind: input, shape index: {}]
  %s2 = inlined_call_operand.vmem [shape: f32[32,1], index: 2, kind: input, shape index: {}]
  %s3 = inlined_call_operand.vmem [shape: f32[1,32], index: 3, kind: input, shape index: {}]
  %s4 = inlined_call_operand.<no memory space> [shape: f32[1,1], index: 4, kind: input, shape index: {}]
  %s5 = inlined_call_operand.hbm [shape: f32[1,128], index: 5, kind: output, shape index: {}]
  %s6 = sld [smem:[#allocation0]]
  $region30: #{tpu_custom_call.1} parent=0
    _
  %s8 = ssub.s32 1, %s6
  %s9 = scalar_select 0, %s8, %s6
  %v10 = vstv %s4
  %11 = vst [vmem:[#allocation2] sm:$0x1] %v10
  $region1: #{tpu_custom_call.1} parent=0
    #allocation3 [shape = 'u8[512]{0}', space=vmem, size = 0x400, scoped, tag = 'output window, operand 0, single buffered']
    #allocation4 [shape = 's32[1]{0}', space=sflag, size = 0x4, scoped, tag = 'scoped memory for tpu_custom_call.1']
    %12 = vsyncpa [#allocation4], 0
    // Predicated region
    $region2: #{tpu_custom_call.1} parent=1 // pred_check
      _
    $region3: #{tpu_custom_call.1} parent=1 // pred_check_branch
      %14 = sbr.rel (0) target = $region5
    $region4: #{tpu_custom_call.1} parent=1 // pred_region
      _
    $region5: #{tpu_custom_call.1} parent=1 // pred_fallthru
      _
    // Predicated region
    $region6: #{tpu_custom_call.1} parent=1 // pred_check
      _
    $region7: #{tpu_custom_call.1} parent=1 // pred_check_branch
      %16 = sbr.rel (0) target = $region9
    $region8: #{tpu_custom_call.1} parent=1 // pred_region
      _
    $region9: #{tpu_custom_call.1} parent=1 // pred_fallthru
      _
    // Predicated region
    $region10: #{tpu_custom_call.1} parent=1 // pred_check
      _
    $region11: #{tpu_custom_call.1} parent=1 // pred_check_branch
      %18 = sbr.rel (0) target = $region13
    $region12: #{tpu_custom_call.1} parent=1 // pred_region
      _
    $region13: #{tpu_custom_call.1} parent=1 // pred_fallthru
      _
    // Predicated region
    $region14: #{tpu_custom_call.1} parent=1 // pred_check
      _
    $region15: #{tpu_custom_call.1} parent=1 // pred_check_branch
      %20 = sbr.rel (0) target = $region17
    $region16: #{tpu_custom_call.1} parent=1 // pred_region
      _
    $region17: #{tpu_custom_call.1} parent=1 // pred_fallthru
      _
    // Predicated region
    $region18: #{tpu_custom_call.1} parent=1 // pred_check
      _
    $region19: #{tpu_custom_call.1} parent=1 // pred_check_branch
      %22 = sbr.rel (0) target = $region21
    $region20: #{tpu_custom_call.1} parent=1 // pred_region
      _
    $region21: #{tpu_custom_call.1} parent=1 // pred_fallthru
      _
    %v23 = vld [vmem:[%s0] sm:$0x1]
    %v24 = vld [vmem:[%s1] sm:$0xff]
    %v25 = vld [vmem:[%s1 + $0x8] sm:$0xff]
    %v26 = vld [vmem:[%s1 + $0x10] sm:$0xff]
    %v27 = vld [vmem:[%s1 + $0x18] sm:$0xff]
    %v28 = vld [vmem:[%s2] sm:$0xff]
    %v29 = vld [vmem:[%s2 + $0x8] sm:$0xff]
    %v30 = vld [vmem:[%s2 + $0x10] sm:$0xff]
    %v31 = vld [vmem:[%s2 + $0x18] sm:$0xff]
    %33 = vset.pattern.permute.xlu0 0
    %34 = vperm.xlu0 %33, %v24
    %v35 = vpop.permute.xlu0 %34
    %38 = vset.pattern.permute.xlu0 0
    %39 = vperm.xlu0 %38, %v25
    %v40 = vpop.permute.xlu0 %39
    %43 = vset.pattern.permute.xlu0 0
    %44 = vperm.xlu0 %43, %v26
    %v45 = vpop.permute.xlu0 %44
    %48 = vset.pattern.permute.xlu0 0
    %49 = vperm.xlu0 %48, %v27
    %v50 = vpop.permute.xlu0 %49
    %v53 = vperm.slane %v23, 0
    %v55 = vmul.f32 %v35, %v53
    %v56 = vmul.f32 %v40, %v53
    %v57 = vmul.f32 %v45, %v53
    %v58 = vmul.f32 %v50, %v53
    %60 = vset.pattern.permute.xlu0 0
    %61 = vperm.xlu0 %60, %v28
    %v62 = vpop.permute.xlu0 %61
    %65 = vset.pattern.permute.xlu0 0
    %66 = vperm.xlu0 %65, %v29
    %v67 = vpop.permute.xlu0 %66
    %70 = vset.pattern.permute.xlu0 0
    %71 = vperm.xlu0 %70, %v30
    %v72 = vpop.permute.xlu0 %71
    %75 = vset.pattern.permute.xlu0 0
    %76 = vperm.xlu0 %75, %v31
    %v77 = vpop.permute.xlu0 %76
    %v79 = vadd.f32 %v62, %v55
    %v80 = vadd.f32 %v67, %v56
    %v81 = vadd.f32 %v72, %v57
    %v82 = vadd.f32 %v77, %v58
    %v83 = vmax.f32 %v79, 0.0
    %v84 = vmax.f32 %v80, 0.0
    %v85 = vmax.f32 %v81, 0.0
    %v86 = vmax.f32 %v82, 0.0
    %v87 = vld [vmem:[%s3] sm:$0x1]
    %v88 = vld [vmem:[#allocation2] sm:$0x1]
    %90 = vset.pattern.permute.xlu0 0
    %91 = vperm.xlu0 %90, %v88
    %v92 = vpop.permute.xlu0 %91
    %v94 = vperm.slane %v92, 0
    %vm95 = vcmask 261120
    %v97 = vsel %vm95, %v87, 0
    %99 = vmatpush.msra.mxu0 0.0
    %100 = vmatpush.msra.mxu0 0.0
    %101 = vmatpush.msra.mxu0 0.0
    %102 = vmatpush.msra.mxu0 0.0
    %103 = vmatpush.msra.mxu0 0.0
    %104 = vmatpush.msra.mxu0 0.0
    %105 = vmatpush.msra.mxu0 0.0
    %106 = vmatpush.msra.mxu0 0.0
    %107 = vmatpush.msra.mxu0 0.0
    %108 = vmatpush.msra.mxu0 0.0
    %109 = vmatpush.msra.mxu0 0.0
    %110 = vmatpush.msra.mxu0 0.0
    %111 = vmatpush.msra.mxu0 %v86
    %112 = vmatpush.msra.mxu0 %v85
    %113 = vmatpush.msra.mxu0 %v84
    %114 = vmatpush.msra.mxu0 %v83
    %115 = vmatmul.f32.gmra.mxu0 %v97
    %v116 = vpop.f32.mrf.mxu0
    %v117 = vadd.f32 %v94, %v116
    %118 = vdwg.mxu0
    %119 = vst [vmem:[#allocation3] sm:$0x1] %v117
    // Predicated region
    $region22: #{tpu_custom_call.1} parent=1 // pred_check
      _
    $region23: #{tpu_custom_call.1} parent=1 // pred_check_branch
      %121 = sbr.rel (0) target = $region25
    $region24: #{tpu_custom_call.1} parent=1 // pred_region
      %123 = vsyncadd [#allocation4], 0
      %s125 = sshll.u32 [#allocation3], 4
      %s126 = int_to_ptr.vmem [resolvable:$true] %s125
      %s127 = sshll.u32 %s5, 4
      %s128 = int_to_ptr.hbm [resolvable:$true] %s127
      %130 = dma.vmem_to_hbm [thread:$0]  %s126, 16, %s128, [#allocation4]
    $region25: #{tpu_custom_call.1} parent=1 // pred_fallthru
      _
    // Predicated region
    $region26: #{tpu_custom_call.1} parent=1 // pred_check
      _
    $region27: #{tpu_custom_call.1} parent=1 // pred_check_branch
      %132 = sbr.rel (0) target = $region29
    $region28: #{tpu_custom_call.1} parent=1 // pred_region
      %134 = dma.done [#allocation4], 16
    $region29: #{tpu_custom_call.1} parent=1 // pred_fallthru
      _
    %135 = vsyncpa [#allocation4], 1

</llo_original>
